<compile_context>
chip_gen: v7x
topology: tpu7x:2x2x1
jax: 0.10.0
libtpu: 0.0.40
codegen_flags: <defaults>
</compile_context>

<pallas_src>
import functools
import math

import jax
import jax.numpy as jnp
from jax.experimental import pallas as pl
from jax.experimental.pallas import tpu as pltpu

EPS = 1e-5
LANE_TILE = 512  # output lane-tile width (multiple of 128 -> unmasked stores)


def _round_up(x, m):
    return -(-x // m) * m


def _vmem_bytes(shape, dtype):
    """Rough (8,128)-padded VMEM footprint of one buffer."""
    shape = tuple(int(d) for d in shape)
    if len(shape) == 1:
        shape = (1,) + shape
    lead = 1
    for d in shape[:-2]:
        lead *= d
    return (lead * _round_up(shape[-2], 8) * _round_up(shape[-1], 128)
            * jnp.dtype(dtype).itemsize)


# ------------------------------ Pallas kernel ------------------------------ #

def _conv_block_kernel(*refs, cin, tap_offsets, lane_tile, n_win, with_bn):
    if with_bn:
        x_ref, w_ref, b_ref, s2_ref, b2_ref, o_ref, win_ref, kbuf_ref = refs
    else:
        x_ref, w_ref, b_ref, o_ref, win_ref, kbuf_ref = refs
    # x_ref   : (n_chunks, Cin, lane_tile) bf16  whole padded image, chunk-major
    # w_ref   : (Cout_pad, k*k*Cin)        bf16  BN1 scale folded in
    # b_ref   : (Cout_pad, 1)              f32   folded conv-bias + BN1 bias
    # o_ref   : (Cout_pad, lane_tile)      bf16  transposed lane-dense out tile
    # win_ref : (Cin, n_win*lane_tile)     f32   tile + halo window scratch
    # kbuf_ref: (k*k*Cin, lane_tile)       f32   fused-K matmul operand scratch

    s = pl.program_id(1)

    # Stage the input window for this output tile (n_win aligned chunks,
    # dynamic index only on the leading chunk axis).
    for j in range(n_win):
        win_ref[:, j * lane_tile:(j + 1) * lane_tile] = (
            x_ref[s + j].astype(jnp.float32))

    # Build the (K, lane_tile) operand so all k*k conv taps contract in ONE
    # MXU matmul (K = k*k*Cin) instead of k*k tiny dots + a VALU add chain.
    for t, off in enumerate(tap_offsets):
        kbuf_ref[t * cin:(t + 1) * cin, :] = win_ref[:, off:off + lane_tile]

    acc = jnp.dot(w_ref[...], kbuf_ref[...].astype(jnp.bfloat16),
                  preferred_element_type=jnp.float32)
    y = jnp.maximum(acc + b_ref[...], 0.0)          # fused BN1 bias + ReLU
    if with_bn:
        y = y * s2_ref[...] + b2_ref[...]           # fused second BN (eval)
    o_ref[...] = y.astype(o_ref.dtype)              # lane-dense bf16 store


# ------------------------------ Host wrapper -------------------------------- #

def conv_block_forward(params, x, *, kernel_size=3, stride=1, with_bn=False,
                       lane_tile=LANE_TILE, out_dtype=jnp.bfloat16):
    if stride != 1:
        # TODO(synk): stride > 1 not implemented (module default is stride=1).
        raise NotImplementedError("ConvBlock Pallas kernel supports stride=1 only")
    assert lane_tile % 128 == 0

    B, cin, H, W = x.shape
    k = kernel_size
    cout = params["conv_w"].shape[0]
    cout_pad = _round_up(cout, 8)                     # 30 -> 32: unmasked stores
    Ho, Wo = H - k + 1, W - k + 1
    k_dim = k * k * cin

    # Full-width output rows; the rightmost (k-1) cols per row are cropped.
    m_full = Ho * W
    n_sub = _round_up(m_full, lane_tile) // lane_tile
    m_pad = n_sub * lane_tile
    halo = (k - 1) * W + (k - 1)
    n_extra = _round_up(halo, lane_tile) // lane_tile if halo else 0
    n_win = 1 + n_extra
    n_chunks = n_sub + n_extra
    lin = n_chunks * lane_tile

    # NCHW -> per-image flat slab, zero padded, chunked along the spatial axis
    # (chunk-major so the kernel indexes chunks on the leading axis).
    x_flat = jnp.pad(x.reshape(B, cin, H * W),
                     ((0, 0), (0, 0), (0, lin - H * W)))
    x_chunks = jnp.transpose(
        x_flat.reshape(B, cin, n_chunks, lane_tile).astype(jnp.bfloat16),
        (0, 2, 1, 3))                                 # (B, n_chunks, Cin, TL)

    # Fold eval-mode BatchNorm2d(30) into the conv weights / bias.
    scale = params["bn_gamma"] * jax.lax.rsqrt(params["bn_var"] + EPS)
    bias = params["bn_beta"] + (params["conv_b"] - params["bn_mean"]) * scale
    w_folded = params["conv_w"] * scale[:, None, None, None]
    # (Cout, Cin, kh, kw) -> (Cout_pad, kh*kw*Cin); tap order (dy, dx, cin).
    w_mat = jnp.transpose(w_folded, (0, 2, 3, 1)).reshape(cout, k_dim)
    w_mat = jnp.pad(w_mat, ((0, cout_pad - cout), (0, 0))).astype(jnp.bfloat16)
    bias_col = jnp.pad(bias, (0, cout_pad - cout)).reshape(cout_pad, 1)
    bias_col = bias_col.astype(jnp.float32)

    tap_offsets = tuple(dy * W + dx for dy in range(k) for dx in range(k))

    in_specs = [
        pl.BlockSpec((None, n_chunks, cin, lane_tile), lambda b, s: (b, 0, 0, 0)),
        pl.BlockSpec((cout_pad, k_dim), lambda b, s: (0, 0)),
        pl.BlockSpec((cout_pad, 1), lambda b, s: (0, 0)),
    ]
    args = [x_chunks, w_mat, bias_col]
    n_small = 1
    if with_bn:
        s2 = params["norm_gamma"] * jax.lax.rsqrt(params["norm_var"] + EPS)
        b2 = params["norm_beta"] - params["norm_mean"] * s2
        s2 = jnp.pad(s2, (0, cout_pad - cout)).reshape(cout_pad, 1).astype(jnp.float32)
        b2 = jnp.pad(b2, (0, cout_pad - cout)).reshape(cout_pad, 1).astype(jnp.float32)
        in_specs += [pl.BlockSpec((cout_pad, 1), lambda b, s: (0, 0))] * 2
        args += [s2, b2]
        n_small = 3

    # VMEM budget: double-buffered blocks + scratch + headroom (v7x has only
    # 64 MiB/TC, so request what is needed instead of a blanket 64 MiB).
    needed = (2 * _vmem_bytes((n_chunks, cin, lane_tile), jnp.bfloat16)
              + 2 * _vmem_bytes((cout_pad, k_dim), jnp.bfloat16)
              + 2 * n_small * _vmem_bytes((cout_pad, 1), jnp.float32)
              + 2 * _vmem_bytes((cout_pad, lane_tile), out_dtype)
              + _vmem_bytes((cin, n_win * lane_tile), jnp.float32)
              + _vmem_bytes((k_dim, lane_tile), jnp.float32))
    vmem_limit = int(min(128 * 1024 * 1024, needed + 16 * 1024 * 1024))

    kernel = functools.partial(
        _conv_block_kernel, cin=cin, tap_offsets=tap_offsets,
        lane_tile=lane_tile, n_win=n_win, with_bn=with_bn)

    out_t = pl.pallas_call(
        kernel,
        out_shape=jax.ShapeDtypeStruct((B, cout_pad, m_pad), out_dtype),
        grid=(B, n_sub),
        in_specs=in_specs,
        out_specs=pl.BlockSpec((None, cout_pad, lane_tile), lambda b, s: (b, 0, s)),
        scratch_shapes=[pltpu.VMEM((cin, n_win * lane_tile), jnp.float32),
                        pltpu.VMEM((k_dim, lane_tile), jnp.float32)],
        compiler_params=pltpu.CompilerParams(
            dimension_semantics=("parallel", "parallel"),
            vmem_limit_bytes=vmem_limit),
    )(*args)

    # Drop the channel pad, spatial tail pad and the k-1 garbage right columns.
    # TODO(synk): this crop is a separate XLA copy; fuse into the consumer if
    # it can accept the padded lane-dense layout directly.
    out = out_t[:, :cout, :m_full].reshape(B, cout, Ho, W)[:, :, :, :Wo]
    return out


# ------------------------------ Reference & params --------------------------- #

def conv_block_reference(params, x, *, kernel_size=3, with_bn=False):
    """Plain-JAX reference with the same bf16 operand quantization."""
    scale = params["bn_gamma"] * jax.lax.rsqrt(params["bn_var"] + EPS)
    bias = params["bn_beta"] + (params["conv_b"] - params["bn_mean"]) * scale
    wf = (params["conv_w"] * scale[:, None, None, None]
          ).astype(jnp.bfloat16).astype(jnp.float32)
    xb = x.astype(jnp.bfloat16).astype(jnp.float32)
    y = jax.lax.conv_general_dilated(
        xb, wf, window_strides=(1, 1), padding="VALID",
        dimension_numbers=("NCHW", "OIHW", "NCHW"),
        precision=jax.lax.Precision.HIGHEST)
    y = jnp.maximum(y + bias[None, :, None, None], 0.0)
    if with_bn:
        s2 = params["norm_gamma"] * jax.lax.rsqrt(params["norm_var"] + EPS)
        b2 = params["norm_beta"] - params["norm_mean"] * s2
        y = y * s2[None, :, None, None] + b2[None, :, None, None]
    return y


def init_params(key, in_channels, out_channels=30, kernel_size=3, with_bn=False):
    assert out_channels == 30, "ConvBlock hard-codes BatchNorm2d(30) after conv"
    k = kernel_size
    fan_in, fan_out = in_channels * k * k, out_channels * k * k
    bound = math.sqrt(6.0 / (fan_in + fan_out))          # xavier_uniform_
    p = dict(
        conv_w=jax.random.uniform(key, (out_channels, in_channels, k, k),
                                  jnp.float32, -bound, bound),
        conv_b=jnp.full((out_channels,), 0.2, jnp.float32),  # bias.fill_(0.2)
        bn_gamma=jnp.ones((out_channels,), jnp.float32),
        bn_beta=jnp.zeros((out_channels,), jnp.float32),
        bn_mean=jnp.zeros((out_channels,), jnp.float32),
        bn_var=jnp.ones((out_channels,), jnp.float32),
    )
    if with_bn:
        p.update(norm_gamma=jnp.ones((out_channels,), jnp.float32),
                 norm_beta=jnp.zeros((out_channels,), jnp.float32),
                 norm_mean=jnp.zeros((out_channels,), jnp.float32),
                 norm_var=jnp.ones((out_channels,), jnp.float32))
    return p


# --------------------------------- Main -------------------------------------- #

if __name__ == "__main__":
    key = jax.random.PRNGKey(0)
    pkey, xkey = jax.random.split(key)

    B, Cin, H, W = 2, 4, 16, 16
    Cout, K = 30, 3
    x = jax.random.normal(xkey, (B, Cin, H, W), jnp.float32)

    for with_bn in (False, True):
        params = init_params(pkey, Cin, Cout, K, with_bn=with_bn)
        if with_bn:  # non-trivial second-BN stats so the fused path is exercised
            k1, k2, k3, k4 = jax.random.split(jax.random.PRNGKey(1), 4)
            params["norm_gamma"] = 1.0 + 0.1 * jax.random.normal(k1, (Cout,))
            params["norm_beta"] = 0.1 * jax.random.normal(k2, (Cout,))
            params["norm_mean"] = 0.1 * jax.random.normal(k3, (Cout,))
            params["norm_var"] = 1.0 + 0.1 * jax.random.uniform(k4, (Cout,))

        fwd = jax.jit(functools.partial(conv_block_forward, kernel_size=K,
                                        with_bn=with_bn))
        out = jax.block_until_ready(fwd(params, x))

        assert out.shape == (B, Cout, H - K + 1, W - K + 1), out.shape
        assert out.dtype == jnp.bfloat16
        out32 = out.astype(jnp.float32)
        assert bool(jnp.all(jnp.isfinite(out32)))
        if not with_bn:
            assert bool(jnp.all(out32 >= 0.0))       # ReLU output

        ref = conv_block_reference(params, x, kernel_size=K, with_bn=with_bn)
        assert bool(jnp.allclose(out32, ref, atol=2e-2, rtol=2e-2)), \
            float(jnp.max(jnp.abs(out32 - ref)))

    print("KERNEL_OK")
</pallas_src>

<mosaic_0001>
module attributes {stable_mosaic.version = 11 : i64} {
  func.func @_conv_block_kernel(%arg0: i32, %arg1: i32, %arg2: memref<1x2x4x512xbf16, #tpu.memory_space<vmem>>, %arg3: memref<32x36xbf16, #tpu.memory_space<vmem>>, %arg4: memref<32x1xf32, #tpu.memory_space<vmem>>, %arg5: memref<1x32x512xbf16, #tpu.memory_space<vmem>>, %arg6: memref<4x1024xf32, #tpu.memory_space<vmem>>, %arg7: memref<36x512xf32, #tpu.memory_space<vmem>>) attributes {dimension_semantics = [#tpu.dimension_semantics<parallel>, #tpu.dimension_semantics<parallel>], iteration_bounds = array<i64: 2, 1>, scalar_prefetch = 0 : i64, scratch_operands = 2 : i64, tpu.core_type = #tpu.core_type<tc>, window_params = [{transform_indices = @transform_0, window_bounds = array<i64: 1, 2, 4, 512>}, {pipeline_mode = #tpu.pipeline_mode<synchronous>, transform_indices = @transform_1, window_bounds = array<i64: 32, 36>}, {pipeline_mode = #tpu.pipeline_mode<synchronous>, transform_indices = @transform_2, window_bounds = array<i64: 32, 1>}, {transform_indices = @transform_3, window_bounds = array<i64: 1, 32, 512>}]} {
    %c0_i32 = arith.constant 0 : i32
    %0 = arith.addi %arg1, %c0_i32 : i32
    %c0 = arith.constant 0 : index
    %1 = arith.index_cast %0 : i32 to index
    %c0_0 = arith.constant 0 : index
    %c0_1 = arith.constant 0 : index
    %2 = vector.load %arg2[%c0, %1, %c0_0, %c0_1] : memref<1x2x4x512xbf16, #tpu.memory_space<vmem>>, vector<1x1x4x512xbf16>
    %3 = vector.shape_cast %2 : vector<1x1x4x512xbf16> to vector<4x512xbf16>
    %4 = arith.extf %3 : vector<4x512xbf16> to vector<4x512xf32>
    %c0_2 = arith.constant 0 : index
    %c0_3 = arith.constant 0 : index
    %5 = vector.load %arg6[%c0_2, %c0_3] : memref<4x1024xf32, #tpu.memory_space<vmem>>, vector<4x512xf32>
    tpu.vector_store %arg6[%c0_2, %c0_3], %4 {strides = array<i32>} : memref<4x1024xf32, #tpu.memory_space<vmem>>, vector<4x512xf32>,
    %c1_i32 = arith.constant 1 : i32
    %6 = arith.addi %arg1, %c1_i32 : i32
    %c0_4 = arith.constant 0 : index
    %7 = arith.index_cast %6 : i32 to index
    %c0_5 = arith.constant 0 : index
    %c0_6 = arith.constant 0 : index
    %8 = vector.load %arg2[%c0_4, %7, %c0_5, %c0_6] : memref<1x2x4x512xbf16, #tpu.memory_space<vmem>>, vector<1x1x4x512xbf16>
    %9 = vector.shape_cast %8 : vector<1x1x4x512xbf16> to vector<4x512xbf16>
    %10 = arith.extf %9 : vector<4x512xbf16> to vector<4x512xf32>
    %c0_7 = arith.constant 0 : index
    %c512 = arith.constant 512 : index
    %11 = vector.load %arg6[%c0_7, %c512] : memref<4x1024xf32, #tpu.memory_space<vmem>>, vector<4x512xf32>
    tpu.vector_store %arg6[%c0_7, %c512], %10 {strides = array<i32>} : memref<4x1024xf32, #tpu.memory_space<vmem>>, vector<4x512xf32>,
    %c0_8 = arith.constant 0 : index
    %c0_9 = arith.constant 0 : index
    %12 = vector.load %arg6[%c0_8, %c0_9] : memref<4x1024xf32, #tpu.memory_space<vmem>>, vector<4x512xf32>
    %c0_10 = arith.constant 0 : index
    %c0_11 = arith.constant 0 : index
    %13 = vector.load %arg7[%c0_10, %c0_11] : memref<36x512xf32, #tpu.memory_space<vmem>>, vector<4x512xf32>
    tpu.vector_store %arg7[%c0_10, %c0_11], %12 {strides = array<i32>} : memref<36x512xf32, #tpu.memory_space<vmem>>, vector<4x512xf32>,
    %c0_12 = arith.constant 0 : index
    %c1 = arith.constant 1 : index
    %14 = vector.load %arg6[%c0_12, %c1] : memref<4x1024xf32, #tpu.memory_space<vmem>>, vector<4x512xf32>
    %c4 = arith.constant 4 : index
    %c0_13 = arith.constant 0 : index
    %15 = vector.load %arg7[%c4, %c0_13] : memref<36x512xf32, #tpu.memory_space<vmem>>, vector<4x512xf32>
    tpu.vector_store %arg7[%c4, %c0_13], %14 {strides = array<i32>} : memref<36x512xf32, #tpu.memory_space<vmem>>, vector<4x512xf32>,
    %c0_14 = arith.constant 0 : index
    %c2 = arith.constant 2 : index
    %16 = vector.load %arg6[%c0_14, %c2] : memref<4x1024xf32, #tpu.memory_space<vmem>>, vector<4x512xf32>
    %c8 = arith.constant 8 : index
    %c0_15 = arith.constant 0 : index
    %17 = vector.load %arg7[%c8, %c0_15] : memref<36x512xf32, #tpu.memory_space<vmem>>, vector<4x512xf32>
    tpu.vector_store %arg7[%c8, %c0_15], %16 {strides = array<i32>} : memref<36x512xf32, #tpu.memory_space<vmem>>, vector<4x512xf32>,
    %c0_16 = arith.constant 0 : index
    %c16 = arith.constant 16 : index
    %18 = vector.load %arg6[%c0_16, %c16] : memref<4x1024xf32, #tpu.memory_space<vmem>>, vector<4x512xf32>
    %c12 = arith.constant 12 : index
    %c0_17 = arith.constant 0 : index
    %19 = vector.load %arg7[%c12, %c0_17] : memref<36x512xf32, #tpu.memory_space<vmem>>, vector<4x512xf32>
    tpu.vector_store %arg7[%c12, %c0_17], %18 {strides = array<i32>} : memref<36x512xf32, #tpu.memory_space<vmem>>, vector<4x512xf32>,
    %c0_18 = arith.constant 0 : index
    %c17 = arith.constant 17 : index
    %20 = vector.load %arg6[%c0_18, %c17] : memref<4x1024xf32, #tpu.memory_space<vmem>>, vector<4x512xf32>
    %c16_19 = arith.constant 16 : index
    %c0_20 = arith.constant 0 : index
    %21 = vector.load %arg7[%c16_19, %c0_20] : memref<36x512xf32, #tpu.memory_space<vmem>>, vector<4x512xf32>
    tpu.vector_store %arg7[%c16_19, %c0_20], %20 {strides = array<i32>} : memref<36x512xf32, #tpu.memory_space<vmem>>, vector<4x512xf32>,
    %c0_21 = arith.constant 0 : index
    %c18 = arith.constant 18 : index
    %22 = vector.load %arg6[%c0_21, %c18] : memref<4x1024xf32, #tpu.memory_space<vmem>>, vector<4x512xf32>
    %c20 = arith.constant 20 : index
    %c0_22 = arith.constant 0 : index
    %23 = vector.load %arg7[%c20, %c0_22] : memref<36x512xf32, #tpu.memory_space<vmem>>, vector<4x512xf32>
    tpu.vector_store %arg7[%c20, %c0_22], %22 {strides = array<i32>} : memref<36x512xf32, #tpu.memory_space<vmem>>, vector<4x512xf32>,
    %c0_23 = arith.constant 0 : index
    %c32 = arith.constant 32 : index
    %24 = vector.load %arg6[%c0_23, %c32] : memref<4x1024xf32, #tpu.memory_space<vmem>>, vector<4x512xf32>
    %c24 = arith.constant 24 : index
    %c0_24 = arith.constant 0 : index
    %25 = vector.load %arg7[%c24, %c0_24] : memref<36x512xf32, #tpu.memory_space<vmem>>, vector<4x512xf32>
    tpu.vector_store %arg7[%c24, %c0_24], %24 {strides = array<i32>} : memref<36x512xf32, #tpu.memory_space<vmem>>, vector<4x512xf32>,
    %c0_25 = arith.constant 0 : index
    %c33 = arith.constant 33 : index
    %26 = vector.load %arg6[%c0_25, %c33] : memref<4x1024xf32, #tpu.memory_space<vmem>>, vector<4x512xf32>
    %c28 = arith.constant 28 : index
    %c0_26 = arith.constant 0 : index
    %27 = vector.load %arg7[%c28, %c0_26] : memref<36x512xf32, #tpu.memory_space<vmem>>, vector<4x512xf32>
    tpu.vector_store %arg7[%c28, %c0_26], %26 {strides = array<i32>} : memref<36x512xf32, #tpu.memory_space<vmem>>, vector<4x512xf32>,
    %c0_27 = arith.constant 0 : index
    %c34 = arith.constant 34 : index
    %28 = vector.load %arg6[%c0_27, %c34] : memref<4x1024xf32, #tpu.memory_space<vmem>>, vector<4x512xf32>
    %c32_28 = arith.constant 32 : index
    %c0_29 = arith.constant 0 : index
    %29 = vector.load %arg7[%c32_28, %c0_29] : memref<36x512xf32, #tpu.memory_space<vmem>>, vector<4x512xf32>
    tpu.vector_store %arg7[%c32_28, %c0_29], %28 {strides = array<i32>} : memref<36x512xf32, #tpu.memory_space<vmem>>, vector<4x512xf32>,
    %c0_30 = arith.constant 0 : index
    %c0_31 = arith.constant 0 : index
    %30 = vector.load %arg3[%c0_30, %c0_31] : memref<32x36xbf16, #tpu.memory_space<vmem>>, vector<32x36xbf16>
    %c0_32 = arith.constant 0 : index
    %c0_33 = arith.constant 0 : index
    %31 = vector.load %arg7[%c0_32, %c0_33] : memref<36x512xf32, #tpu.memory_space<vmem>>, vector<36x512xf32>
    %32 = arith.truncf %31 : vector<36x512xf32> to vector<36x512xbf16>
    %cst = arith.constant dense<0.000000e+00> : vector<32x512xf32>
    %33 = tpu.matmul %30, %32, %cst {dimension_numbers = #tpu.dot_dimension_numbers<[1], [0], [0], [1], [0, 0, 1, 1], [], []>} : vector<32x36xbf16>, vector<36x512xbf16>, vector<32x512xf32> -> vector<32x512xf32>
    %c0_34 = arith.constant 0 : index
    %c0_35 = arith.constant 0 : index
    %34 = vector.load %arg4[%c0_34, %c0_35] : memref<32x1xf32, #tpu.memory_space<vmem>>, vector<32x1xf32>
    %35 = vector.broadcast %34 : vector<32x1xf32> to vector<32x512xf32>
    %36 = arith.addf %33, %35 : vector<32x512xf32>
    %cst_36 = arith.constant 0.000000e+00 : f32
    %37 = vector.broadcast %cst_36 : f32 to vector<32x512xf32>
    %38 = arith.maximumf %36, %37 : vector<32x512xf32>
    %39 = arith.truncf %38 : vector<32x512xf32> to vector<32x512xbf16>
    %c0_37 = arith.constant 0 : index
    %c0_38 = arith.constant 0 : index
    %c0_39 = arith.constant 0 : index
    %40 = vector.load %arg5[%c0_37, %c0_38, %c0_39] : memref<1x32x512xbf16, #tpu.memory_space<vmem>>, vector<1x32x512xbf16>
    %41 = vector.shape_cast %40 : vector<1x32x512xbf16> to vector<32x512xbf16>
    %42 = vector.shape_cast %39 : vector<32x512xbf16> to vector<1x32x512xbf16>
    tpu.vector_store %arg5[%c0_37, %c0_38, %c0_39], %42 {strides = array<i32>} : memref<1x32x512xbf16, #tpu.memory_space<vmem>>, vector<1x32x512xbf16>,
    return
  }
  func.func @transform_0(%arg0: i32, %arg1: i32) -> (i32, i32, i32, i32) {
    %c0_i32 = arith.constant 0 : i32
    %c0_i32_0 = arith.constant 0 : i32
    %c0_i32_1 = arith.constant 0 : i32
    %c0_i32_2 = arith.constant 0 : i32
    return %arg0, %c0_i32, %c0_i32_0, %c0_i32_1 : i32, i32, i32, i32
  }
  func.func @transform_1(%arg0: i32, %arg1: i32) -> (i32, i32) {
    %c0_i32 = arith.constant 0 : i32
    %c0_i32_0 = arith.constant 0 : i32
    %c0_i32_1 = arith.constant 0 : i32
    return %c0_i32, %c0_i32_0 : i32, i32
  }
  func.func @transform_2(%arg0: i32, %arg1: i32) -> (i32, i32) {
    %c0_i32 = arith.constant 0 : i32
    %c0_i32_0 = arith.constant 0 : i32
    %c0_i32_1 = arith.constant 0 : i32
    return %c0_i32, %c0_i32_0 : i32, i32
  }
  func.func @transform_3(%arg0: i32, %arg1: i32) -> (i32, i32, i32) {
    %c0_i32 = arith.constant 0 : i32
    %c0_i32_0 = arith.constant 0 : i32
    return %arg0, %c0_i32, %arg1 : i32, i32, i32
  }
}

</mosaic_0001>

<llo_original>
// kernel: conv_block_forward.1
$region0: #{conv_block_forward.1}
  #allocation0 [shape = 'u32[]', space=smem, size = 0x4, offset = 0x4, fixed_abs, tag = 'smem constant byte address 0x4 - core index']
  #allocation1 [shape = 'u32[144,128]{1,0:T(1,128)}', space=vmem, size = 0x12000, scoped, tag = 'internal scratch']
  #allocation2 [shape = 'f32[4,1024]{1,0:T(4,128)}', space=vmem, size = 0x4000, scoped, tag = 'scratch operand']
  #allocation3 [shape = 'f32[36,512]{1,0:T(8,128)}', space=vmem, size = 0x14000, scoped, tag = 'scratch operand']
  %s0 = inlined_call_operand.vmem [shape: bf16[2,2,4,512], index: 0, kind: input, shape index: {}]
  %s1 = inlined_call_operand.vmem [shape: bf16[32,36], index: 1, kind: input, shape index: {}]
  %s2 = inlined_call_operand.vmem [shape: f32[32,1], index: 2, kind: input, shape index: {}]
  %s3 = inlined_call_operand.vmem [shape: bf16[2,32,512], index: 3, kind: output, shape index: {}]
  %s4 = sld [smem:[#allocation0]]
  $region45: #{conv_block_forward.1} parent=0
    _
  %s6 = ssub.s32 1, %s4
  %s7 = scalar_select 0, %s6, %s4
  loop: start=0, step=1, limit=4
  $region2: #{conv_block_forward.1} parent=0 // loop_pre_header
    _
  $region3: #{conv_block_forward.1} parent=0 // loop_header
    %s9 = sphi 0, %s13
    %p10 = scmp.ge.s32.totalorder %s9, 4
    %s16 = sphi 0, %s28
    %s17 = sphi 0, %s24
    %s18 = sphi 0, %s16
    %s19 = sphi 0, %s17
    %s20 = sphi 0, %s18
    %s21 = sphi 0, %s19
    %s31 = sphi 0, %s33
    %s34 = sphi 0, %s31
    %s35 = sphi 0, %s34
    %s51 = sphi 0, %s35
    %s55 = sphi 0, %s55
    %s57 = sphi 0, %s55
    %s58 = sphi 0, %s57
    %s72 = sphi 0, %s58
    %s76 = sphi 0, %s76
    %s78 = sphi 0, %s76
    %s79 = sphi 0, %s78
    %s93 = sphi 0, %s79
    %s101 = sphi 0, %s103
    %s104 = sphi 0, %s101
    %s105 = sphi 0, %s104
    %s121 = sphi 0, %s105
  $region4: #{conv_block_forward.1} parent=0 // loop_header_branch
    %12 = sbr.rel (%p10) target = $region8
  $region5: #{conv_block_forward.1} parent=0 // loop_body
    %s14 = ssub.s32 %s9, 1
    %s15 = ssub.s32 %s9, 2
    %s22 = sadd.s32 1, %s17
    %p23 = scmp.ge.s32.totalorder %s22, 1
    %s24 = scalar_select %p23, 0, %s22
    %s25 = sadd.s32 1, %s16
    %s26 = scalar_select %p23, %s25, %s16
    %p27 = scmp.ge.s32.totalorder %s26, 2
    %s28 = scalar_select %p27, 0, %s26
    %s29 = ssub.s32 %s16, %s28
    %p30 = scmp.eq.s32.totalorder %s29, 0
    %s32 = sadd.s32 %s31, 1
    %s33 = scalar_select %p30, %s31, %s32
    %p36 = pneg %p30
    %p37 = scmp.eq.s32.totalorder %s9, 1
    %p38 = por %p36, %p37
    %p39 = scmp.ne.s32.totalorder %s31, %s34
    %p40 = scmp.eq.s32.totalorder %s9, 0
    %p41 = por %p39, %p40
    %p42 = scmp.ne.s32.totalorder %s31, %s34
    %p43 = scmp.eq.s32.totalorder %s14, 1
    %p44 = por %p42, %p43
    %p45 = scmp.ne.s32.totalorder %s34, %s35
    %p46 = scmp.eq.s32.totalorder %s14, 0
    %p47 = por %p45, %p46
    %p48 = scmp.ne.s32.totalorder %s34, %s35
    %p49 = scmp.eq.s32.totalorder %s15, 1
    %p50 = por %p48, %p49
    %p52 = scmp.ne.s32.totalorder %s35, %s51
    %p53 = scmp.eq.s32.totalorder %s15, 0
    %p54 = por %p52, %p53
    %s56 = sadd.s32 %s55, 1
    %p59 = scmp.eq.s32.totalorder %s9, 1
    %p60 = scmp.ne.s32.totalorder %s55, %s57
    %p61 = scmp.eq.s32.totalorder %s9, 0
    %p62 = por %p60, %p61
    %p63 = scmp.ne.s32.totalorder %s55, %s57
    %p64 = scmp.eq.s32.totalorder %s14, 1
    %p65 = por %p63, %p64
    %p66 = scmp.ne.s32.totalorder %s57, %s58
    %p67 = scmp.eq.s32.totalorder %s14, 0
    %p68 = por %p66, %p67
    %p69 = scmp.ne.s32.totalorder %s57, %s58
    %p70 = scmp.eq.s32.totalorder %s15, 1
    %p71 = por %p69, %p70
    %p73 = scmp.ne.s32.totalorder %s58, %s72
    %p74 = scmp.eq.s32.totalorder %s15, 0
    %p75 = por %p73, %p74
    %s77 = sadd.s32 %s76, 1
    %p80 = scmp.eq.s32.totalorder %s9, 1
    %p81 = scmp.ne.s32.totalorder %s76, %s78
    %p82 = scmp.eq.s32.totalorder %s9, 0
    %p83 = por %p81, %p82
    %p84 = scmp.ne.s32.totalorder %s76, %s78
    %p85 = scmp.eq.s32.totalorder %s14, 1
    %p86 = por %p84, %p85
    %p87 = scmp.ne.s32.totalorder %s78, %s79
    %p88 = scmp.eq.s32.totalorder %s14, 0
    %p89 = por %p87, %p88
    %p90 = scmp.ne.s32.totalorder %s78, %s79
    %p91 = scmp.eq.s32.totalorder %s15, 1
    %p92 = por %p90, %p91
    %p94 = scmp.ne.s32.totalorder %s79, %s93
    %p95 = scmp.eq.s32.totalorder %s15, 0
    %p96 = por %p94, %p95
    %s97 = ssub.s32 %s16, %s28
    %s98 = ssub.s32 %s17, %s24
    %s99 = sor.u32 %s97, %s98
    %p100 = scmp.eq.s32.totalorder %s99, 0
    %s102 = sadd.s32 %s101, 1
    %s103 = scalar_select %p100, %s101, %s102
    %p106 = pneg %p100
    %p107 = scmp.eq.s32.totalorder %s9, 1
    %p108 = por %p106, %p107
    %p109 = scmp.ne.s32.totalorder %s101, %s104
    %p110 = scmp.eq.s32.totalorder %s9, 0
    %p111 = por %p109, %p110
    %p112 = scmp.ne.s32.totalorder %s101, %s104
    %p113 = scmp.eq.s32.totalorder %s14, 1
    %p114 = por %p112, %p113
    %p115 = scmp.ne.s32.totalorder %s104, %s105
    %p116 = scmp.eq.s32.totalorder %s14, 0
    %p117 = por %p115, %p116
    %p118 = scmp.ne.s32.totalorder %s104, %s105
    %p119 = scmp.eq.s32.totalorder %s15, 1
    %p120 = por %p118, %p119
    %p122 = scmp.ne.s32.totalorder %s105, %s121
    %p123 = scmp.eq.s32.totalorder %s15, 0
    %p124 = por %p122, %p123
    %p125 = scmp.le.s32.totalorder 1, %s9
    %p126 = scmp.lt.s32.totalorder %s9, 3
    %p127 = pnand %p125, %p126
    %p128 = pneg %p127
    // Predicated region
    $region9: #{conv_block_forward.1} parent=5 // pred_check
      _
    $region10: #{conv_block_forward.1} parent=5 // pred_check_branch
      %130 = sbr.rel (%p127) target = $region12
    $region11: #{conv_block_forward.1} parent=5 // pred_region
      %s131 = ssub.s32 %s9, 1
      // Predicated region
      $region13: #{conv_block_forward.1} parent=11 // pred_check
        %p132 = pneg %p68
      $region14: #{conv_block_forward.1} parent=11 // pred_check_branch
        %134 = sbr.rel (%p132) target = $region16
      $region15: #{conv_block_forward.1} parent=11 // pred_region
        _
      $region16: #{conv_block_forward.1} parent=11 // pred_fallthru
        _
      // Predicated region
      $region17: #{conv_block_forward.1} parent=11 // pred_check
        %p135 = pneg %p89
      $region18: #{conv_block_forward.1} parent=11 // pred_check_branch
        %137 = sbr.rel (%p135) target = $region20
      $region19: #{conv_block_forward.1} parent=11 // pred_region
        _
      $region20: #{conv_block_forward.1} parent=11 // pred_fallthru
        _
    $region12: #{conv_block_forward.1} parent=5 // pred_fallthru
      _
    %p138 = scmp.lt.s32.totalorder %s9, 2
    // Predicated region
    $region21: #{conv_block_forward.1} parent=5 // pred_check
      %p139 = pneg %p138
    $region22: #{conv_block_forward.1} parent=5 // pred_check_branch
      %141 = sbr.rel (%p139) target = $region24
    $region23: #{conv_block_forward.1} parent=5 // pred_region
      // Predicated region
      $region25: #{conv_block_forward.1} parent=23 // pred_check
        %p142 = pneg %p41
      $region26: #{conv_block_forward.1} parent=23 // pred_check_branch
        %144 = sbr.rel (%p142) target = $region28
      $region27: #{conv_block_forward.1} parent=23 // pred_region
        %p145 = scmp.lt.s32.totalorder %s16, 1
        %s146 = scalar_select %p145, %s16, 1
        %s147 = smul.addr %s146, 8
        %s148 = smul.addr %s147, 2
        %s149 = scalar_lea.vmem %s0, %s148
      $region28: #{conv_block_forward.1} parent=23 // pred_fallthru
        _
    $region24: #{conv_block_forward.1} parent=5 // pred_fallthru
      _
    %p150 = scmp.le.s32.totalorder 1, %s9
    %p151 = scmp.lt.s32.totalorder %s9, 3
    %p152 = pnand %p150, %p151
    %p153 = pneg %p152
    // Predicated region
    $region29: #{conv_block_forward.1} parent=5 // pred_check
      _
    $region30: #{conv_block_forward.1} parent=5 // pred_check_branch
      %155 = sbr.rel (%p152) target = $region32
    $region31: #{conv_block_forward.1} parent=5 // pred_region
      %s156 = ssub.s32 %s9, 1
      %p157 = scmp.lt.s32.totalorder %s18, 1
      %s158 = scalar_select %p157, %s18, 1
      %s159 = smul.addr %s158, 8
      %s160 = smul.addr %s159, 2
      %s161 = scalar_lea.vmem %s0, %s160
      %p162 = pneg %p47
      %p163 = pneg %p44
      %p164 = pneg %p68
      %p165 = pneg %p65
      %p166 = pneg %p89
      %p167 = pneg %p86
      %p168 = pneg %p117
      %p169 = pneg %p114
      %s170 = smul.u32 4, %s19
      %p171 = scmp.lt.s32.totalorder %s18, 1
      %s172 = scalar_select %p171, %s18, 1
      %p173 = scmp.lt.s32.totalorder %s170, 3
      %s174 = scalar_select %p173, %s170, 3
      %s175 = smul.addr %s172, 16
      %s176 = sadd.s32 %s174, %s175
      %s177 = smul.addr %s176, 4
      %s178 = scalar_lea.vmem %s3, %s177
      %p179 = scmp.lt.s32.totalorder %s18, 1
      %s180 = scalar_select %p179, %s18, 1
      %s181 = smul.addr %s180, 8
      %s182 = smul.addr %s181, 2
      %s183 = scalar_lea.vmem %s0, %s182
      %s184 = smul.u32 4, %s19
      %p185 = scmp.lt.s32.totalorder %s18, 1
      %s186 = scalar_select %p185, %s18, 1
      %p187 = scmp.lt.s32.totalorder %s184, 3
      %s188 = scalar_select %p187, %s184, 3
      %s189 = smul.addr %s186, 16
      %s190 = sadd.s32 %s188, %s189
      %s191 = smul.addr %s190, 4
      %s192 = scalar_lea.vmem %s3, %s191
      %s193 = smul.u32 4, %s19
      %s195 = smul.u32 %s19, 4
      %s196 = smul.addr %s195, 2
      %s197 = scalar_lea.vmem %s183, %s196
      %v198 = vld [vmem:[%s197] sm:$0xff]
      %v199 = vunpack.c.l.bf16 %v198
      %v200 = vunpack.c.h.bf16 %v198
      %201 = vst [vmem:[#allocation2] sm:$0xff] %v199
      %202 = vst [vmem:[#allocation2 + $0x8] sm:$0xff] %v200
      %s203 = sadd.s32 %s19, 1
      %s204 = smul.u32 %s203, 4
      %s205 = smul.addr %s204, 2
      %s206 = scalar_lea.vmem %s183, %s205
      %v207 = vld [vmem:[%s206] sm:$0xff]
      %v208 = vunpack.c.l.bf16 %v207
      %v209 = vunpack.c.h.bf16 %v207
      %210 = vst [vmem:[#allocation2 + $0x10] sm:$0xff] %v208
      %211 = vst [vmem:[#allocation2 + $0x18] sm:$0xff] %v209
      %v212 = vld [vmem:[#allocation2] sm:$0xff]
      %v213 = vld [vmem:[#allocation2 + $0x8] sm:$0xff]
      %v216 = vcombine.high %v212, %v212
      %v217 = vcombine.high %v213, %v213
      %220 = vst [vmem:[#allocation3] sm:$0xf] %v212
      %221 = vst [vmem:[#allocation3 + $0x8] sm:$0xf] %v216
      %222 = vst [vmem:[#allocation3 + $0x10] sm:$0xf] %v213
      %223 = vst [vmem:[#allocation3 + $0x18] sm:$0xf] %v217
      %v224 = vld [vmem:[#allocation2] sm:$0xff]
      %v225 = vld [vmem:[#allocation2 + $0x8] sm:$0xff]
      %v226 = vld [vmem:[#allocation2 + $0x10] sm:$0xf]
      %v230 = vcombine.low %v224, %v224
      %v231 = vcombine.low %v225, %v225
      %v232 = vcombine.low %v226, %v226
      %233 = vrot.lane.b32.xlu0 %v230, 127
      %v234 = vpop.permute.xlu0 %233
      %235 = vrot.lane.b32.xlu0 %v224, 127
      %v236 = vpop.permute.xlu0 %235
      %237 = vrot.lane.b32.xlu0 %v231, 127
      %v238 = vpop.permute.xlu0 %237
      %239 = vrot.lane.b32.xlu0 %v225, 127
      %v240 = vpop.permute.xlu0 %239
      %241 = vrot.lane.b32.xlu0 %v232, 127
      %v242 = vpop.permute.xlu0 %241
      %vm243 = vcmask 1039360
      %v244 = vsel %vm243, %v234, %v236
      %v245 = vsel %vm243, %v236, %v238
      %v246 = vsel %vm243, %v238, %v240
      %v247 = vsel %vm243, %v240, %v242
      %252 = vst [vmem:[#allocation3] sm:$0xf0] %v244
      %253 = vst [vmem:[#allocation3 + $0x8] sm:$0xf0] %v245
      %254 = vst [vmem:[#allocation3 + $0x10] sm:$0xf0] %v246
      %255 = vst [vmem:[#allocation3 + $0x18] sm:$0xf0] %v247
      %v256 = vld [vmem:[#allocation2] sm:$0xff]
      %v257 = vld [vmem:[#allocation2 + $0x8] sm:$0xff]
      %v258 = vld [vmem:[#allocation2 + $0x10] sm:$0xf]
      %v262 = vcombine.high %v256, %v256
      %v263 = vcombine.high %v257, %v257
      %264 = vrot.lane.b32.xlu0 %v256, 126
      %v265 = vpop.permute.xlu0 %264
      %266 = vrot.lane.b32.xlu0 %v262, 126
      %v267 = vpop.permute.xlu0 %266
      %268 = vrot.lane.b32.xlu0 %v257, 126
      %v269 = vpop.permute.xlu0 %268
      %270 = vrot.lane.b32.xlu0 %v263, 126
      %v271 = vpop.permute.xlu0 %270
      %272 = vrot.lane.b32.xlu0 %v258, 126
      %v273 = vpop.permute.xlu0 %272
      %vm274 = vcmask 1031168
      %v275 = vsel %vm274, %v265, %v267
      %v276 = vsel %vm274, %v267, %v269
      %v277 = vsel %vm274, %v269, %v271
      %v278 = vsel %vm274, %v271, %v273
      %283 = vst [vmem:[#allocation3 + $0x20] sm:$0xf] %v275
      %284 = vst [vmem:[#allocation3 + $0x28] sm:$0xf] %v276
      %285 = vst [vmem:[#allocation3 + $0x30] sm:$0xf] %v277
      %286 = vst [vmem:[#allocation3 + $0x38] sm:$0xf] %v278
      %v287 = vld [vmem:[#allocation2] sm:$0xff]
      %v288 = vld [vmem:[#allocation2 + $0x8] sm:$0xff]
      %v289 = vld [vmem:[#allocation2 + $0x10] sm:$0xf]
      %v293 = vcombine.low %v287, %v287
      %v294 = vcombine.low %v288, %v288
      %v295 = vcombine.low %v289, %v289
      %296 = vrot.lane.b32.xlu0 %v293, 112
      %v297 = vpop.permute.xlu0 %296
      %298 = vrot.lane.b32.xlu0 %v287, 112
      %v299 = vpop.permute.xlu0 %298
      %300 = vrot.lane.b32.xlu0 %v294, 112
      %v301 = vpop.permute.xlu0 %300
      %302 = vrot.lane.b32.xlu0 %v288, 112
      %v303 = vpop.permute.xlu0 %302
      %304 = vrot.lane.b32.xlu0 %v295, 112
      %v305 = vpop.permute.xlu0 %304
      %vm306 = vcmask 916480
      %v307 = vsel %vm306, %v297, %v299
      %v308 = vsel %vm306, %v299, %v301
      %v309 = vsel %vm306, %v301, %v303
      %v310 = vsel %vm306, %v303, %v305
      %315 = vst [vmem:[#allocation3 + $0x20] sm:$0xf0] %v307
      %316 = vst [vmem:[#allocation3 + $0x28] sm:$0xf0] %v308
      %317 = vst [vmem:[#allocation3 + $0x30] sm:$0xf0] %v309
      %318 = vst [vmem:[#allocation3 + $0x38] sm:$0xf0] %v310
      %v319 = vld [vmem:[#allocation2] sm:$0xff]
      %v320 = vld [vmem:[#allocation2 + $0x8] sm:$0xff]
      %v321 = vld [vmem:[#allocation2 + $0x10] sm:$0xf]
      %v325 = vcombine.high %v319, %v319
      %v326 = vcombine.high %v320, %v320
      %327 = vrot.lane.b32.xlu0 %v319, 111
      %v328 = vpop.permute.xlu0 %327
      %329 = vrot.lane.b32.xlu0 %v325, 111
      %v330 = vpop.permute.xlu0 %329
      %331 = vrot.lane.b32.xlu0 %v320, 111
      %v332 = vpop.permute.xlu0 %331
      %333 = vrot.lane.b32.xlu0 %v326, 111
      %v334 = vpop.permute.xlu0 %333
      %335 = vrot.lane.b32.xlu0 %v321, 111
      %v336 = vpop.permute.xlu0 %335
      %vm337 = vcmask 908288
      %v338 = vsel %vm337, %v328, %v330
      %v339 = vsel %vm337, %v330, %v332
      %v340 = vsel %vm337, %v332, %v334
      %v341 = vsel %vm337, %v334, %v336
      %346 = vst [vmem:[#allocation3 + $0x40] sm:$0xf] %v338
      %347 = vst [vmem:[#allocation3 + $0x48] sm:$0xf] %v339
      %348 = vst [vmem:[#allocation3 + $0x50] sm:$0xf] %v340
      %349 = vst [vmem:[#allocation3 + $0x58] sm:$0xf] %v341
      %v350 = vld [vmem:[#allocation2] sm:$0xff]
      %v351 = vld [vmem:[#allocation2 + $0x8] sm:$0xff]
      %v352 = vld [vmem:[#allocation2 + $0x10] sm:$0xf]
      %v356 = vcombine.low %v350, %v350
      %v357 = vcombine.low %v351, %v351
      %v358 = vcombine.low %v352, %v352
      %359 = vrot.lane.b32.xlu0 %v356, 110
      %v360 = vpop.permute.xlu0 %359
      %361 = vrot.lane.b32.xlu0 %v350, 110
      %v362 = vpop.permute.xlu0 %361
      %363 = vrot.lane.b32.xlu0 %v357, 110
      %v364 = vpop.permute.xlu0 %363
      %365 = vrot.lane.b32.xlu0 %v351, 110
      %v366 = vpop.permute.xlu0 %365
      %367 = vrot.lane.b32.xlu0 %v358, 110
      %v368 = vpop.permute.xlu0 %367
      %vm369 = vcmask 900096
      %v370 = vsel %vm369, %v360, %v362
      %v371 = vsel %vm369, %v362, %v364
      %v372 = vsel %vm369, %v364, %v366
      %v373 = vsel %vm369, %v366, %v368
      %378 = vst [vmem:[#allocation3 + $0x40] sm:$0xf0] %v370
      %379 = vst [vmem:[#allocation3 + $0x48] sm:$0xf0] %v371
      %380 = vst [vmem:[#allocation3 + $0x50] sm:$0xf0] %v372
      %381 = vst [vmem:[#allocation3 + $0x58] sm:$0xf0] %v373
      %v382 = vld [vmem:[#allocation2] sm:$0xff]
      %v383 = vld [vmem:[#allocation2 + $0x8] sm:$0xff]
      %v384 = vld [vmem:[#allocation2 + $0x10] sm:$0xf]
      %v388 = vcombine.high %v382, %v382
      %v389 = vcombine.high %v383, %v383
      %390 = vrot.lane.b32.xlu0 %v382, 96
      %v391 = vpop.permute.xlu0 %390
      %392 = vrot.lane.b32.xlu0 %v388, 96
      %v393 = vpop.permute.xlu0 %392
      %394 = vrot.lane.b32.xlu0 %v383, 96
      %v395 = vpop.permute.xlu0 %394
      %396 = vrot.lane.b32.xlu0 %v389, 96
      %v397 = vpop.permute.xlu0 %396
      %398 = vrot.lane.b32.xlu0 %v384, 96
      %v399 = vpop.permute.xlu0 %398
      %vm400 = vcmask 785408
      %v401 = vsel %vm400, %v391, %v393
      %v402 = vsel %vm400, %v393, %v395
      %v403 = vsel %vm400, %v395, %v397
      %v404 = vsel %vm400, %v397, %v399
      %409 = vst [vmem:[#allocation3 + $0x60] sm:$0xf] %v401
      %410 = vst [vmem:[#allocation3 + $0x68] sm:$0xf] %v402
      %411 = vst [vmem:[#allocation3 + $0x70] sm:$0xf] %v403
      %412 = vst [vmem:[#allocation3 + $0x78] sm:$0xf] %v404
      %v413 = vld [vmem:[#allocation2] sm:$0xff]
      %v414 = vld [vmem:[#allocation2 + $0x8] sm:$0xff]
      %v415 = vld [vmem:[#allocation2 + $0x10] sm:$0xf]
      %v419 = vcombine.low %v413, %v413
      %v420 = vcombine.low %v414, %v414
      %v421 = vcombine.low %v415, %v415
      %422 = vrot.lane.b32.xlu0 %v419, 95
      %v423 = vpop.permute.xlu0 %422
      %424 = vrot.lane.b32.xlu0 %v413, 95
      %v425 = vpop.permute.xlu0 %424
      %426 = vrot.lane.b32.xlu0 %v420, 95
      %v427 = vpop.permute.xlu0 %426
      %428 = vrot.lane.b32.xlu0 %v414, 95
      %v429 = vpop.permute.xlu0 %428
      %430 = vrot.lane.b32.xlu0 %v421, 95
      %v431 = vpop.permute.xlu0 %430
      %vm432 = vcmask 777216
      %v433 = vsel %vm432, %v423, %v425
      %v434 = vsel %vm432, %v425, %v427
      %v435 = vsel %vm432, %v427, %v429
      %v436 = vsel %vm432, %v429, %v431
      %441 = vst [vmem:[#allocation3 + $0x60] sm:$0xf0] %v433
      %442 = vst [vmem:[#allocation3 + $0x68] sm:$0xf0] %v434
      %443 = vst [vmem:[#allocation3 + $0x70] sm:$0xf0] %v435
      %444 = vst [vmem:[#allocation3 + $0x78] sm:$0xf0] %v436
      %v445 = vld [vmem:[#allocation2] sm:$0xff]
      %v446 = vld [vmem:[#allocation2 + $0x8] sm:$0xff]
      %v447 = vld [vmem:[#allocation2 + $0x10] sm:$0xf]
      %v451 = vcombine.high %v445, %v445
      %v452 = vcombine.high %v446, %v446
      %453 = vrot.lane.b32.xlu0 %v445, 94
      %v454 = vpop.permute.xlu0 %453
      %455 = vrot.lane.b32.xlu0 %v451, 94
      %v456 = vpop.permute.xlu0 %455
      %457 = vrot.lane.b32.xlu0 %v446, 94
      %v458 = vpop.permute.xlu0 %457
      %459 = vrot.lane.b32.xlu0 %v452, 94
      %v460 = vpop.permute.xlu0 %459
      %461 = vrot.lane.b32.xlu0 %v447, 94
      %v462 = vpop.permute.xlu0 %461
      %vm463 = vcmask 769024
      %v464 = vsel %vm463, %v454, %v456
      %v465 = vsel %vm463, %v456, %v458
      %v466 = vsel %vm463, %v458, %v460
      %v467 = vsel %vm463, %v460, %v462
      %472 = vst [vmem:[#allocation3 + $0x80] sm:$0xf] %v464
      %473 = vst [vmem:[#allocation3 + $0x88] sm:$0xf] %v465
      %474 = vst [vmem:[#allocation3 + $0x90] sm:$0xf] %v466
      %475 = vst [vmem:[#allocation3 + $0x98] sm:$0xf] %v467
      %v476 = vld [vmem:[%s1] sm:$0xf]
      %v477 = vld [vmem:[%s1 + $0x4] sm:$0xf]
      %v478 = vld [vmem:[%s1 + $0x8] sm:$0xf]
      %v479 = vld [vmem:[%s1 + $0xc] sm:$0xf]
      %v480 = vld [vmem:[#allocation3] sm:$0xff]
      %v481 = vld [vmem:[#allocation3 + $0x8] sm:$0xff]
      %v482 = vld [vmem:[#allocation3 + $0x10] sm:$0xff]
      %v483 = vld [vmem:[#allocation3 + $0x18] sm:$0xff]
      %v484 = vld [vmem:[#allocation3 + $0x20] sm:$0xff]
      %v485 = vld [vmem:[#allocation3 + $0x28] sm:$0xff]
      %v486 = vld [vmem:[#allocation3 + $0x30] sm:$0xff]
      %v487 = vld [vmem:[#allocation3 + $0x38] sm:$0xff]
      %v488 = vld [vmem:[#allocation3 + $0x40] sm:$0xff]
      %v489 = vld [vmem:[#allocation3 + $0x48] sm:$0xff]
      %v490 = vld [vmem:[#allocation3 + $0x50] sm:$0xff]
      %v491 = vld [vmem:[#allocation3 + $0x58] sm:$0xff]
      %v492 = vld [vmem:[#allocation3 + $0x60] sm:$0xff]
      %v493 = vld [vmem:[#allocation3 + $0x68] sm:$0xff]
      %v494 = vld [vmem:[#allocation3 + $0x70] sm:$0xff]
      %v495 = vld [vmem:[#allocation3 + $0x78] sm:$0xff]
      %v496 = vld [vmem:[#allocation3 + $0x80] sm:$0xf]
      %v497 = vld [vmem:[#allocation3 + $0x88] sm:$0xf]
      %v498 = vld [vmem:[#allocation3 + $0x90] sm:$0xf]
      %v499 = vld [vmem:[#allocation3 + $0x98] sm:$0xf]
      %v500 = vpack.c.bf16 %v484, %v480
      %v501 = vpack.c.bf16 %v485, %v481
      %v502 = vpack.c.bf16 %v486, %v482
      %v503 = vpack.c.bf16 %v487, %v483
      %v504 = vpack.c.bf16 %v492, %v488
      %v505 = vpack.c.bf16 %v493, %v489
      %v506 = vpack.c.bf16 %v494, %v490
      %v507 = vpack.c.bf16 %v495, %v491
      %v508 = vpack.c.bf16 %v496, %v496
      %v509 = vpack.c.bf16 %v497, %v497
      %v510 = vpack.c.bf16 %v498, %v498
      %v511 = vpack.c.bf16 %v499, %v499
      %v512 = vld [vmem:[%s2] sm:$0xff]
      %v513 = vld [vmem:[%s2 + $0x8] sm:$0xff]
      %v514 = vld [vmem:[%s2 + $0x10] sm:$0xff]
      %v515 = vld [vmem:[%s2 + $0x18] sm:$0xff]
      %517 = vset.pattern.permute.xlu0 0
      %518 = vperm.xlu0 %517, %v512
      %v519 = vpop.permute.xlu0 %518
      %522 = vset.pattern.permute.xlu0 0
      %523 = vperm.xlu0 %522, %v513
      %v524 = vpop.permute.xlu0 %523
      %527 = vset.pattern.permute.xlu0 0
      %528 = vperm.xlu0 %527, %v514
      %v529 = vpop.permute.xlu0 %528
      %532 = vset.pattern.permute.xlu0 0
      %533 = vperm.xlu0 %532, %v515
      %v534 = vpop.permute.xlu0 %533
      %v540 = vunpack.c.l.b16 %v476
      %v541 = vunpack.c.l.b16 %v477
      %v542 = vunpack.c.l.b16 %v478
      %v543 = vunpack.c.l.b16 %v479
      %v544 = vpack.c.b16 %v541, %v540
      %v545 = vpack.c.b16 %v543, %v542
      %vm546 = vcmask 293888
      %v548 = vsel %vm546, %v544, 0
      %v551 = vsel %vm546, %v545, 0
      %vm553 = vcmask 1041408
      %v555 = vsel %vm553, %v508, 0
      %v558 = vsel %vm553, %v509, 0
      %v561 = vsel %vm553, %v510, 0
      %v564 = vsel %vm553, %v511, 0
      %566 = vmatprep.subr.bf16.mxu0 %v501
      %567 = vmatpush1.bf16.msra.mxu0 %v500
      %568 = vmatprep.subr.bf16.mxu0 %v505
      %569 = vmatpush1.bf16.msra.mxu0 %v504
      %570 = vmatprep.subr.bf16.mxu0 %v558
      %571 = vmatpush1.bf16.msra.mxu0 %v555
      %572 = vmatprep.subr.bf16.mxu0 0
      %573 = vmatpush1.bf16.msra.mxu0 0
      %574 = vmatprep.subr.bf16.mxu0 0
      %575 = vmatpush1.bf16.msra.mxu0 0
      %576 = vmatprep.subr.bf16.mxu0 0
      %577 = vmatpush1.bf16.msra.mxu0 0
      %578 = vmatprep.subr.bf16.mxu0 0
      %579 = vmatpush1.bf16.msra.mxu0 0
      %580 = vmatprep.subr.bf16.mxu0 0
      %581 = vmatpush1.bf16.msra.mxu0 0
      %582 = vmatprep.subr.bf16.mxu0 0
      %583 = vmatpush1.bf16.msra.mxu0 0
      %584 = vmatprep.subr.bf16.mxu0 0
      %585 = vmatpush1.bf16.msra.mxu0 0
      %586 = vmatprep.subr.bf16.mxu0 0
      %587 = vmatpush1.bf16.msra.mxu0 0
      %588 = vmatprep.subr.bf16.mxu0 0
      %589 = vmatpush1.bf16.msra.mxu0 0
      %590 = vmatprep.subr.bf16.mxu0 0
      %591 = vmatpush1.bf16.msra.mxu0 0
      %592 = vmatprep.subr.bf16.mxu0 0
      %593 = vmatpush1.bf16.msra.mxu0 0
      %594 = vmatprep.subr.bf16.mxu0 0
      %595 = vmatpush1.bf16.msra.mxu0 0
      %596 = vmatprep.subr.bf16.mxu0 0
      %597 = vmatpush1.bf16.msra.mxu0 0
      %598 = vmatprep.mubr.bf16.mxu0 0
      %599 = vmatmul.mubr.bf16.gmra.mrb[0].mxu0 %v548
      %v600 = vpop.f32.mrb[0].mxu0
      %v601 = vadd.f32 %v519, %v600
      %v602 = vpop.f32.mrb[0].mxu0
      %v603 = vadd.f32 %v519, %v602
      %v604 = vpop.f32.mrb[0].mxu0
      %v605 = vadd.f32 %v524, %v604
      %v606 = vpop.f32.mrb[0].mxu0
      %v607 = vadd.f32 %v524, %v606
      %608 = vmatprep.mubr.bf16.mxu0 0
      %609 = vmatmul.mubr.bf16.gmra.mrb[0].mxu0 %v551
      %v610 = vpop.f32.mrb[0].mxu0
      %v611 = vadd.f32 %v529, %v610
      %v612 = vpop.f32.mrb[0].mxu0
      %v613 = vadd.f32 %v529, %v612
      %v614 = vpop.f32.mrb[0].mxu0
      %v615 = vadd.f32 %v534, %v614
      %v616 = vpop.f32.mrb[0].mxu0
      %v617 = vadd.f32 %v534, %v616
      %618 = vdwg.mxu0
      %619 = vmatprep.subr.bf16.mxu0 %v503
      %620 = vmatpush1.bf16.msra.mxu0 %v502
      %621 = vmatprep.subr.bf16.mxu0 %v507
      %622 = vmatpush1.bf16.msra.mxu0 %v506
      %623 = vmatprep.subr.bf16.mxu0 %v564
      %624 = vmatpush1.bf16.msra.mxu0 %v561
      %625 = vmatprep.subr.bf16.mxu0 0
      %626 = vmatpush1.bf16.msra.mxu0 0
      %627 = vmatprep.subr.bf16.mxu0 0
      %628 = vmatpush1.bf16.msra.mxu0 0
      %629 = vmatprep.subr.bf16.mxu0 0
      %630 = vmatpush1.bf16.msra.mxu0 0
      %631 = vmatprep.subr.bf16.mxu0 0
      %632 = vmatpush1.bf16.msra.mxu0 0
      %633 = vmatprep.subr.bf16.mxu0 0
      %634 = vmatpush1.bf16.msra.mxu0 0
      %635 = vmatprep.subr.bf16.mxu0 0
      %636 = vmatpush1.bf16.msra.mxu0 0
      %637 = vmatprep.subr.bf16.mxu0 0
      %638 = vmatpush1.bf16.msra.mxu0 0
      %639 = vmatprep.subr.bf16.mxu0 0
      %640 = vmatpush1.bf16.msra.mxu0 0
      %641 = vmatprep.subr.bf16.mxu0 0
      %642 = vmatpush1.bf16.msra.mxu0 0
      %643 = vmatprep.subr.bf16.mxu0 0
      %644 = vmatpush1.bf16.msra.mxu0 0
      %645 = vmatprep.subr.bf16.mxu0 0
      %646 = vmatpush1.bf16.msra.mxu0 0
      %647 = vmatprep.subr.bf16.mxu0 0
      %648 = vmatpush1.bf16.msra.mxu0 0
      %649 = vmatprep.subr.bf16.mxu0 0
      %650 = vmatpush1.bf16.msra.mxu0 0
      %651 = vmatprep.mubr.bf16.mxu0 0
      %652 = vmatmul.mubr.bf16.gmra.mrb[0].mxu0 %v548
      %v653 = vpop.f32.mrb[0].mxu0
      %v654 = vadd.f32 %v519, %v653
      %v655 = vpop.f32.mrb[0].mxu0
      %v656 = vadd.f32 %v519, %v655
      %v657 = vpop.f32.mrb[0].mxu0
      %v658 = vadd.f32 %v524, %v657
      %v659 = vpop.f32.mrb[0].mxu0
      %v660 = vadd.f32 %v524, %v659
      %661 = vmatprep.mubr.bf16.mxu0 0
      %662 = vmatmul.mubr.bf16.gmra.mrb[0].mxu0 %v551
      %v663 = vpop.f32.mrb[0].mxu0
      %v664 = vadd.f32 %v529, %v663
      %v665 = vpop.f32.mrb[0].mxu0
      %v666 = vadd.f32 %v529, %v665
      %v667 = vpop.f32.mrb[0].mxu0
      %v668 = vadd.f32 %v534, %v667
      %v669 = vpop.f32.mrb[0].mxu0
      %v670 = vadd.f32 %v534, %v669
      %671 = vdwg.mxu0
      %v672 = vmax.f32 %v601, 0.0
      %v673 = vmax.f32 %v603, 0.0
      %v674 = vmax.f32 %v654, 0.0
      %v675 = vmax.f32 %v656, 0.0
      %v676 = vmax.f32 %v605, 0.0
      %v677 = vmax.f32 %v607, 0.0
      %v678 = vmax.f32 %v658, 0.0
      %v679 = vmax.f32 %v660, 0.0
      %v680 = vmax.f32 %v611, 0.0
      %v681 = vmax.f32 %v613, 0.0
      %v682 = vmax.f32 %v664, 0.0
      %v683 = vmax.f32 %v666, 0.0
      %v684 = vmax.f32 %v615, 0.0
      %v685 = vmax.f32 %v617, 0.0
      %v686 = vmax.f32 %v668, 0.0
      %v687 = vmax.f32 %v670, 0.0
      %v688 = vpack.c.bf16 %v676, %v672
      %v689 = vpack.c.bf16 %v677, %v673
      %v690 = vpack.c.bf16 %v678, %v674
      %v691 = vpack.c.bf16 %v679, %v675
      %v692 = vpack.c.bf16 %v684, %v680
      %v693 = vpack.c.bf16 %v685, %v681
      %v694 = vpack.c.bf16 %v686, %v682
      %v695 = vpack.c.bf16 %v687, %v683
      %v704 = vunpack.c.l.b16 %v688
      %v705 = vunpack.c.l.b16 %v689
      %v706 = vunpack.c.l.b16 %v690
      %v707 = vunpack.c.l.b16 %v691
      %v708 = vunpack.c.h.b16 %v688
      %v709 = vunpack.c.h.b16 %v689
      %v710 = vunpack.c.h.b16 %v690
      %v711 = vunpack.c.h.b16 %v691
      %v712 = vunpack.c.l.b16 %v692
      %v713 = vunpack.c.l.b16 %v693
      %v714 = vunpack.c.l.b16 %v694
      %v715 = vunpack.c.l.b16 %v695
      %v716 = vunpack.c.h.b16 %v692
      %v717 = vunpack.c.h.b16 %v693
      %v718 = vunpack.c.h.b16 %v694
      %v719 = vunpack.c.h.b16 %v695
      %v720 = vpack.c.b16 %v705, %v704
      %v721 = vpack.c.b16 %v707, %v706
      %v722 = vpack.c.b16 %v709, %v708
      %v723 = vpack.c.b16 %v711, %v710
      %v724 = vpack.c.b16 %v713, %v712
      %v725 = vpack.c.b16 %v715, %v714
      %v726 = vpack.c.b16 %v717, %v716
      %v727 = vpack.c.b16 %v719, %v718
      %736 = vst [vmem:[%s192] sm:$0xff] %v720
      %737 = vst [vmem:[%s192 + $0x8] sm:$0xff] %v721
      %738 = vst [vmem:[%s192 + $0x10] sm:$0xff] %v722
      %739 = vst [vmem:[%s192 + $0x18] sm:$0xff] %v723
      %740 = vst [vmem:[%s192 + $0x20] sm:$0xff] %v724
      %741 = vst [vmem:[%s192 + $0x28] sm:$0xff] %v725
      %742 = vst [vmem:[%s192 + $0x30] sm:$0xff] %v726
      %743 = vst [vmem:[%s192 + $0x38] sm:$0xff] %v727
      %s744 = smul.u32 4, %s19
      %p745 = scmp.lt.s32.totalorder %s18, 1
      %s746 = scalar_select %p745, %s18, 1
      %p747 = scmp.lt.s32.totalorder %s744, 3
      %s748 = scalar_select %p747, %s744, 3
      %s749 = smul.addr %s746, 16
      %s750 = sadd.s32 %s748, %s749
      %s751 = smul.addr %s750, 4
      %s752 = scalar_lea.vmem %s3, %s751
      // Predicated region
      $region33: #{conv_block_forward.1} parent=31 // pred_check
        %p753 = pneg %p114
      $region34: #{conv_block_forward.1} parent=31 // pred_check_branch
        %755 = sbr.rel (%p753) target = $region36
      $region35: #{conv_block_forward.1} parent=31 // pred_region
        %s756 = smul.u32 4, %s19
      $region36: #{conv_block_forward.1} parent=31 // pred_fallthru
        _
    $region32: #{conv_block_forward.1} parent=5 // pred_fallthru
      _
    %p757 = scmp.le.s32.totalorder 2, %s9
    // Predicated region
    $region37: #{conv_block_forward.1} parent=5 // pred_check
      %p758 = pneg %p757
    $region38: #{conv_block_forward.1} parent=5 // pred_check_branch
      %760 = sbr.rel (%p758) target = $region40
    $region39: #{conv_block_forward.1} parent=5 // pred_region
      %s761 = ssub.s32 %s9, 2
      // Predicated region
      $region41: #{conv_block_forward.1} parent=39 // pred_check
        %p762 = pneg %p120
      $region42: #{conv_block_forward.1} parent=39 // pred_check_branch
        %764 = sbr.rel (%p762) target = $region44
      $region43: #{conv_block_forward.1} parent=39 // pred_region
        %s765 = smul.u32 4, %s21
        %p766 = scmp.lt.s32.totalorder %s20, 1
        %s767 = scalar_select %p766, %s20, 1
        %p768 = scmp.lt.s32.totalorder %s765, 3
        %s769 = scalar_select %p768, %s765, 3
        %s770 = smul.addr %s767, 16
        %s771 = sadd.s32 %s769, %s770
        %s772 = smul.addr %s771, 4
        %s773 = scalar_lea.vmem %s3, %s772
      $region44: #{conv_block_forward.1} parent=39 // pred_fallthru
        _
    $region40: #{conv_block_forward.1} parent=5 // pred_fallthru
      _
  $region6: #{conv_block_forward.1} parent=0 // loop_footer
    %s13 = sadd.s32 1, %s9
  $region7: #{conv_block_forward.1} parent=0 // loop_footer_branch
    %8 = sbr.rel target = $region3
  $region8: #{conv_block_forward.1} parent=0 // loop_exit
    _

</llo_original>
